<compile_context>
chip_gen: v7x
topology: tpu7x:2x2x1
jax: 0.10.0
libtpu: 0.0.40
codegen_flags: <defaults>
</compile_context>

<pallas_src>
import functools
import math

import jax
import jax.numpy as jnp
from jax.experimental import pallas as pl
from jax.experimental.pallas import tpu as pltpu


# ------------------------------- helpers ------------------------------------

def _round_up(x, m):
    return ((x + m - 1) // m) * m


def _cdiv(a, b):
    return -(-a // b)


# ----------------- Pallas kernel: W^T @ A + bias, LeakyReLU -------------------
#
# Per grid step (one batch image x one pixel tile):
#   w_ref : (P, K)  bf16   P = stride^2*Cout (sublanes), K = taps*Cin
#   b_ref : (P, 1)  f32
#   a_ref : (K, tm) bf16   tm = pixel tile (lanes, multiple of 128)
#   o_ref : (P, tm) out_dtype
# K and P are small for this module, so they stay un-tiled (full-extent blocks,
# weight resident in VMEM); only the pixel dim M is tiled -> no K-phase logic,
# no accumulator scratch needed.
# TODO(synk): add a K reduction grid axis if taps*Cin ever grows past a few
# thousand (VMEM pressure); not needed for this network's layer sizes.

def _matmul_bias_act_kernel(w_ref, b_ref, a_ref, o_ref, *, negative_slope):
    acc = jnp.dot(w_ref[...], a_ref[...], preferred_element_type=jnp.float32)
    acc = acc + b_ref[...]                        # (P, 1) broadcasts over lanes
    if negative_slope is not None:                # fused LeakyReLU epilogue
        acc = jnp.where(acc >= 0, acc, negative_slope * acc)
    o_ref[...] = acc.astype(o_ref.dtype)


def fused_deconv_matmul(w_t, bias_p, a, *, negative_slope=0.2,
                        out_dtype=jnp.float32, tm=None):
    """out[n] = LeakyReLU(w_t @ a[n] + bias_p) for every batch image n.

    w_t: (P, K), bias_p: (P,), a: (N, K, M)  ->  (N, P, M).
    Lane dim of every block is M (large), so nothing skinny is padded to 128.
    """
    P, K = w_t.shape
    N, K2, M = a.shape
    assert K2 == K

    # Sublane-align the small dims (cheap), lane-align / tile the pixel dim.
    Pp = _round_up(P, 16)
    Kp = _round_up(K, 16)
    Ml = _round_up(M, 128)
    if tm is None:
        nb = max(1, _cdiv(Ml, 1024))
        if nb == 1 and Ml >= 256:
            nb = 2                       # >=2 parallel M blocks (v7x megacore)
        tm = _round_up(_cdiv(Ml, nb), 128)
    Mp = _round_up(Ml, tm)

    w_p = jnp.zeros((Pp, Kp), jnp.bfloat16).at[:P, :K].set(w_t.astype(jnp.bfloat16))
    b_p = jnp.zeros((Pp, 1), jnp.float32).at[:P, 0].set(bias_p.astype(jnp.float32))
    a_p = a.astype(jnp.bfloat16)
    if Kp != K or Mp != M:
        a_p = jnp.pad(a_p, ((0, 0), (0, Kp - K), (0, Mp - M)))

    grid = (N, Mp // tm)
    kernel = functools.partial(_matmul_bias_act_kernel,
                               negative_slope=negative_slope)
    out_bytes = jnp.dtype(out_dtype).itemsize

    out = pl.pallas_call(
        kernel,
        out_shape=jax.ShapeDtypeStruct((N, Pp, Mp), out_dtype),
        grid_spec=pltpu.PrefetchScalarGridSpec(
            num_scalar_prefetch=0,
            grid=grid,
            in_specs=[
                pl.BlockSpec((Pp, Kp), lambda n, i: (0, 0)),   # weight: VMEM-resident
                pl.BlockSpec((Pp, 1), lambda n, i: (0, 0)),    # bias:   VMEM-resident
                pl.BlockSpec((None, Kp, tm), lambda n, i: (n, 0, i)),
            ],
            out_specs=pl.BlockSpec((None, Pp, tm), lambda n, i: (n, 0, i)),
        ),
        compiler_params=pltpu.CompilerParams(
            dimension_semantics=("parallel", "parallel"),
            vmem_limit_bytes=32 * 1024 * 1024,
        ),
        cost_estimate=pl.CostEstimate(
            flops=2 * N * Pp * Kp * Mp,
            transcendentals=0,
            bytes_accessed=int(N * Kp * Mp * 2 + Pp * Kp * 2
                               + N * Pp * Mp * out_bytes),
        ),
    )(w_p, b_p, a_p)
    return out[:, :P, :M]


# --------------- sub-pixel lowering of ConvTranspose2d (no dilation zeros) ----

def _axis_taps(k, stride, padding, dilation):
    """For one spatial axis, map each kernel tap ky to the output phase r it feeds
    and the (compressed) input-window slot it reads.
    Derivation: oy = iy*stride - padding + ky*dilation, with oy = q*stride + r
    =>  r = (ky*dilation - padding) mod stride,  iy = q + delta,
        delta = (r + padding - ky*dilation) / stride  (exact).
    Returns (entries, offs): entries = [(ky, r, slot)], offs = sorted distinct deltas.
    """
    raw = []
    for ky in range(k):
        r = (ky * dilation - padding) % stride
        delta = (r + padding - ky * dilation) // stride
        raw.append((ky, r, delta))
    offs = sorted({d for _, _, d in raw})
    slot = {d: i for i, d in enumerate(offs)}
    return [(ky, r, slot[d]) for ky, r, d in raw], offs


def _pad_axis(x, axis, offs, q_len, src_len):
    """Zero-pad/crop `axis` so windows x[..., q + offs[j] - offs[0], ...] are valid
    for every q in [0, q_len).  Handles padding > dilation*(k-1) (cropping) too."""
    start = offs[0]
    stop = (q_len - 1) + offs[-1] + 1
    pad_before = max(0, -start)
    pad_after = max(0, stop - src_len)
    if pad_before or pad_after:
        pads = [(0, 0)] * x.ndim
        pads[axis] = (pad_before, pad_after)
        x = jnp.pad(x, pads)
    idx = [slice(None)] * x.ndim
    idx[axis] = slice(start + pad_before, stop + pad_before)
    return x[tuple(idx)]


def _subpixel_patches(x_pad, offs_y, offs_x, Hq, Wq):
    """x_pad: (N, Cin, Hp, Wp) NCHW, already padded.
    Returns A: (N, Cin*Ty*Tx, Hq*Wq), K rows ordered (cin, jy, jx).
    TODO(synk): fuse this window gather into the Pallas kernel (manual halo DMA per
    tap) to remove the remaining Ty*Tx read amplification of the input in HBM."""
    cols = []
    for oy in offs_y:
        y0 = oy - offs_y[0]
        for ox in offs_x:
            x0 = ox - offs_x[0]
            cols.append(x_pad[:, :, y0:y0 + Hq, x0:x0 + Wq])
    pat = jnp.stack(cols, axis=2)                     # (N, Cin, T, Hq, Wq)
    N, Cin, T = pat.shape[0], pat.shape[1], pat.shape[2]
    return pat.reshape(N, Cin * T, Hq * Wq)


def _weight_to_subpixel_matrix(w, taps_y, taps_x, Ty, Tx, stride):
    """w: (Cin, Cout, kH, kW) -> W^T: (stride^2*Cout, Cin*Ty*Tx), rows ordered
    (ry, rx, cout), cols ordered (cin, jy, jx) to match _subpixel_patches."""
    Cin, Cout = w.shape[0], w.shape[1]
    w2 = jnp.zeros((stride, stride, Cout, Cin, Ty, Tx), w.dtype)
    for ky, ry, jy in taps_y:                         # k*k trace-time iterations
        for kx, rx, jx in taps_x:
            w2 = w2.at[ry, rx, :, :, jy, jx].set(w[:, :, ky, kx].T)
    return w2.reshape(stride * stride * Cout, Cin * Ty * Tx)


def _spectral_normalize(weight, u, eps=1e-12):
    """torch.nn.utils.spectral_norm for ConvTranspose2d (dim=1), one power iteration."""
    cout = weight.shape[1]
    w_mat = jnp.transpose(weight, (1, 0, 2, 3)).reshape(cout, -1)
    v = w_mat.T @ u
    v = v / (jnp.linalg.norm(v) + eps)
    u_new = w_mat @ v
    u_new = u_new / (jnp.linalg.norm(u_new) + eps)
    sigma = u_new @ (w_mat @ v)
    return weight / sigma, u_new


# -------------------------------- module -------------------------------------

class DeConvWithActivationPallas:
    """JAX/Pallas port of DeConvWithActivation:
       spectral_norm(ConvTranspose2d(...)) followed by LeakyReLU(0.2)."""

    def __init__(self, in_channels, out_channels, kernel_size, stride=1, padding=1,
                 output_padding=0, dilation=1, groups=1, bias=True,
                 negative_slope=0.2, out_dtype=jnp.float32, key=None):
        assert groups == 1  # TODO(synk): grouped transposed conv not implemented
        if key is None:
            key = jax.random.PRNGKey(0)
        self.stride = int(stride)
        self.padding = int(padding)
        self.output_padding = int(output_padding)
        self.dilation = int(dilation)
        self.kH = self.kW = int(kernel_size)
        self.negative_slope = negative_slope
        self.out_dtype = out_dtype        # bf16 here halves output HBM write

        kw_, kb_, ku_ = jax.random.split(key, 3)
        # The reference module calls nn.init.kaiming_normal_ on the weight;
        # PyTorch fan_in for a (Cin, Cout, kH, kW) deconv weight is Cout*kH*kW.
        fan_in = out_channels * self.kH * self.kW
        std = math.sqrt(2.0 / fan_in)
        self.weight = std * jax.random.normal(
            kw_, (in_channels, out_channels, self.kH, self.kW), jnp.float32)
        if bias:
            bound = 1.0 / math.sqrt(fan_in)
            self.bias = jax.random.uniform(kb_, (out_channels,), jnp.float32,
                                           -bound, bound)
        else:
            self.bias = jnp.zeros((out_channels,), jnp.float32)
        u0 = jax.random.normal(ku_, (out_channels,), jnp.float32)
        self.u = u0 / jnp.linalg.norm(u0)   # spectral-norm power-iteration state

    def __call__(self, x_nchw, update_u=True):
        # NOTE: update_u mutates Python-side state (PyTorch training-mode behavior).
        # Pass update_u=False (eval) or manage `u` functionally before jitting.
        w_sn, u_new = _spectral_normalize(self.weight, self.u)
        if update_u:
            self.u = u_new

        s, p, d, op = self.stride, self.padding, self.dilation, self.output_padding
        kH, kW = self.kH, self.kW
        N, Cin, H, W = x_nchw.shape
        Cout = w_sn.shape[1]
        Hout = (H - 1) * s - 2 * p + d * (kH - 1) + op + 1
        Wout = (W - 1) * s - 2 * p + d * (kW - 1) + op + 1
        Hq, Wq = _cdiv(Hout, s), _cdiv(Wout, s)

        taps_y, offs_y = _axis_taps(kH, s, p, d)
        taps_x, offs_x = _axis_taps(kW, s, p, d)
        Ty, Tx = len(offs_y), len(offs_x)

        x = x_nchw.astype(jnp.bfloat16)                 # bf16 through the glue
        x = _pad_axis(x, 2, offs_y, Hq, H)
        x = _pad_axis(x, 3, offs_x, Wq, W)
        a = _subpixel_patches(x, offs_y, offs_x, Hq, Wq)   # (N, taps*Cin, Hq*Wq)

        w_t = _weight_to_subpixel_matrix(w_sn, taps_y, taps_x, Ty, Tx, s)
        bias_p = jnp.tile(self.bias, s * s)             # rows ordered (ry, rx, cout)

        y = fused_deconv_matmul(w_t, bias_p, a,
                                negative_slope=self.negative_slope,
                                out_dtype=self.out_dtype)   # (N, s*s*Cout, Hq*Wq)

        # Pixel-shuffle the phases back into the spatial grid; crop to NCHW output.
        y = y.reshape(N, s, s, Cout, Hq, Wq)
        y = y.transpose(0, 3, 4, 1, 5, 2).reshape(N, Cout, Hq * s, Wq * s)
        return y[:, :, :Hout, :Wout]


# ------------------------------ reference & main ------------------------------

def _ref_deconv(x, w, b, stride, padding, output_padding, dilation, negative_slope):
    """Plain-XLA ConvTranspose2d + bias + LeakyReLU reference (NCHW)."""
    kH, kW = w.shape[2], w.shape[3]
    w_flip = jnp.transpose(jnp.flip(w, (2, 3)), (1, 0, 2, 3))   # (Cout, Cin, kH, kW)
    ph = dilation * (kH - 1) - padding
    pw = dilation * (kW - 1) - padding
    y = jax.lax.conv_general_dilated(
        x, w_flip, window_strides=(1, 1),
        padding=((ph, ph + output_padding), (pw, pw + output_padding)),
        lhs_dilation=(stride, stride), rhs_dilation=(dilation, dilation),
        dimension_numbers=("NCHW", "OIHW", "NCHW"),
        precision=jax.lax.Precision.HIGHEST)
    y = y + b[None, :, None, None]
    return jnp.where(y >= 0, y, negative_slope * y)


if __name__ == "__main__":
    key = jax.random.PRNGKey(0)
    kx, kp1, kp2 = jax.random.split(key, 3)
    x = jax.random.normal(kx, (2, 4, 16, 16), jnp.float32)      # NCHW like PyTorch

    def check(mod, stride, padding, output_padding, expect_shape):
        # snapshot spectral-norm weight before the call (the call advances u)
        w_sn, _ = _spectral_normalize(mod.weight, mod.u)
        y = mod(x)
        jax.block_until_ready(y)
        assert y.shape == expect_shape, (y.shape, expect_shape)
        # Reference on bf16-quantized operands (the kernel feeds the MXU bf16 and
        # accumulates f32), so only summation-order noise should remain.
        xq = x.astype(jnp.bfloat16).astype(jnp.float32)
        wq = w_sn.astype(jnp.bfloat16).astype(jnp.float32)
        ref = _ref_deconv(xq, wq, mod.bias, stride, padding, output_padding,
                          mod.dilation, mod.negative_slope)
        err = float(jnp.max(jnp.abs(y.astype(jnp.float32) - ref)))
        assert err < 2e-2, err
        return y

    # typical decoder usage: 2x upsample (kernel 3, stride 2, pad 1, output_pad 1)
    up = DeConvWithActivationPallas(4, 8, kernel_size=3, stride=2, padding=1,
                                    output_padding=1, key=kp1)
    check(up, 2, 1, 1, (2, 8, 32, 32))

    # stride-1 transposed conv (same spatial size)
    s1 = DeConvWithActivationPallas(4, 4, kernel_size=3, stride=1, padding=1,
                                    key=kp2)
    check(s1, 1, 1, 0, (2, 4, 16, 16))

    print("KERNEL_OK")
</pallas_src>

<mosaic_0001>
module attributes {stable_mosaic.version = 11 : i64} {
  func.func @_matmul_bias_act_kernel(%arg0: i32, %arg1: i32, %arg2: memref<32x16xbf16, #tpu.memory_space<vmem>>, %arg3: memref<32x1xf32, #tpu.memory_space<vmem>>, %arg4: memref<1x16x128xbf16, #tpu.memory_space<vmem>>, %arg5: memref<1x32x128xf32, #tpu.memory_space<vmem>>) attributes {dimension_semantics = [#tpu.dimension_semantics<parallel>, #tpu.dimension_semantics<parallel>], iteration_bounds = array<i64: 2, 2>, scalar_prefetch = 0 : i64, scratch_operands = 0 : i64, tpu.core_type = #tpu.core_type<tc>, window_params = [{pipeline_mode = #tpu.pipeline_mode<synchronous>, transform_indices = @transform_0, window_bounds = array<i64: 32, 16>}, {pipeline_mode = #tpu.pipeline_mode<synchronous>, transform_indices = @transform_1, window_bounds = array<i64: 32, 1>}, {transform_indices = @transform_2, window_bounds = array<i64: 1, 16, 128>}, {transform_indices = @transform_3, window_bounds = array<i64: 1, 32, 128>}]} {
    %c0 = arith.constant 0 : index
    %c0_0 = arith.constant 0 : index
    %0 = vector.load %arg2[%c0, %c0_0] : memref<32x16xbf16, #tpu.memory_space<vmem>>, vector<32x16xbf16>
    %c0_1 = arith.constant 0 : index
    %c0_2 = arith.constant 0 : index
    %c0_3 = arith.constant 0 : index
    %1 = vector.load %arg4[%c0_1, %c0_2, %c0_3] : memref<1x16x128xbf16, #tpu.memory_space<vmem>>, vector<1x16x128xbf16>
    %2 = vector.shape_cast %1 : vector<1x16x128xbf16> to vector<16x128xbf16>
    %cst = arith.constant dense<0.000000e+00> : vector<32x128xf32>
    %3 = tpu.matmul %0, %2, %cst {dimension_numbers = #tpu.dot_dimension_numbers<[1], [0], [0], [1], [0, 0, 1, 1], [], []>} : vector<32x16xbf16>, vector<16x128xbf16>, vector<32x128xf32> -> vector<32x128xf32>
    %c0_4 = arith.constant 0 : index
    %c0_5 = arith.constant 0 : index
    %4 = vector.load %arg3[%c0_4, %c0_5] : memref<32x1xf32, #tpu.memory_space<vmem>>, vector<32x1xf32>
    %5 = vector.broadcast %4 : vector<32x1xf32> to vector<32x128xf32>
    %6 = arith.addf %3, %5 : vector<32x128xf32>
    %cst_6 = arith.constant 0.000000e+00 : f32
    %7 = vector.broadcast %cst_6 : f32 to vector<32x128xf32>
    %8 = arith.cmpf oge, %6, %7 : vector<32x128xf32>
    %cst_7 = arith.constant 2.000000e-01 : f32
    %9 = vector.broadcast %cst_7 : f32 to vector<32x128xf32>
    %10 = arith.mulf %9, %6 : vector<32x128xf32>
    %11 = arith.select %8, %6, %10 : vector<32x128xi1>, vector<32x128xf32>
    %c0_8 = arith.constant 0 : index
    %c0_9 = arith.constant 0 : index
    %c0_10 = arith.constant 0 : index
    %12 = vector.load %arg5[%c0_8, %c0_9, %c0_10] : memref<1x32x128xf32, #tpu.memory_space<vmem>>, vector<1x32x128xf32>
    %13 = vector.shape_cast %12 : vector<1x32x128xf32> to vector<32x128xf32>
    %14 = vector.shape_cast %11 : vector<32x128xf32> to vector<1x32x128xf32>
    tpu.vector_store %arg5[%c0_8, %c0_9, %c0_10], %14 {strides = array<i32>} : memref<1x32x128xf32, #tpu.memory_space<vmem>>, vector<1x32x128xf32>,
    return
  }
  func.func @transform_0(%arg0: i32, %arg1: i32) -> (i32, i32) {
    %c0_i32 = arith.constant 0 : i32
    %c0_i32_0 = arith.constant 0 : i32
    %c0_i32_1 = arith.constant 0 : i32
    return %c0_i32, %c0_i32_0 : i32, i32
  }
  func.func @transform_1(%arg0: i32, %arg1: i32) -> (i32, i32) {
    %c0_i32 = arith.constant 0 : i32
    %c0_i32_0 = arith.constant 0 : i32
    %c0_i32_1 = arith.constant 0 : i32
    return %c0_i32, %c0_i32_0 : i32, i32
  }
  func.func @transform_2(%arg0: i32, %arg1: i32) -> (i32, i32, i32) {
    %c0_i32 = arith.constant 0 : i32
    %c0_i32_0 = arith.constant 0 : i32
    return %arg0, %c0_i32, %arg1 : i32, i32, i32
  }
  func.func @transform_3(%arg0: i32, %arg1: i32) -> (i32, i32, i32) {
    %c0_i32 = arith.constant 0 : i32
    %c0_i32_0 = arith.constant 0 : i32
    return %arg0, %c0_i32, %arg1 : i32, i32, i32
  }
}

</mosaic_0001>

<llo_original>
// kernel: tpu_custom_call.1
$region0: #{tpu_custom_call.1}
  #allocation0 [shape = 'u32[]', space=smem, size = 0x4, offset = 0x4, fixed_abs, tag = 'smem constant byte address 0x4 - core index']
  #allocation1 [shape = 'u32[144,128]{1,0:T(1,128)}', space=vmem, size = 0x12000, scoped, tag = 'internal scratch']
  %s0 = inlined_call_operand.vmem [shape: bf16[32,16], index: 0, kind: input, shape index: {}]
  %s1 = inlined_call_operand.vmem [shape: f32[32,1], index: 1, kind: input, shape index: {}]
  %s2 = inlined_call_operand.vmem [shape: bf16[2,16,256], index: 2, kind: input, shape index: {}]
  %s3 = inlined_call_operand.hbm [shape: f32[2,32,256], index: 3, kind: output, shape index: {}]
  %s4 = sld [smem:[#allocation0]]
  $region86: #{tpu_custom_call.1} parent=0
    _
  %s6 = ssub.s32 1, %s4
  %s7 = scalar_select 0, %s6, %s4
  $region1: #{tpu_custom_call.1} parent=0
    #allocation2 [shape = 'u8[8192]{0}', space=vmem, size = 0x2000, scoped, tag = 'input window, operand 2']
    #allocation3 [shape = 'u8[32768]{0}', space=vmem, size = 0x8000, scoped, tag = 'output window, operand 0']
    #allocation4 [shape = 's32[2]{0}', space=sflag, size = 0x8, scoped, tag = 'scoped memory for tpu_custom_call.1']
    %8 = vsyncpa [#allocation4], 0
    %s9 = scalar_lea.sflag [#allocation4], 1
    %10 = vsyncpa %s9, 0
    loop: start=0, step=1, limit=6
    $region2: #{tpu_custom_call.1} parent=1 // loop_pre_header
      _
    $region3: #{tpu_custom_call.1} parent=1 // loop_header
      %s12 = sphi 0, %s16
      %p13 = scmp.ge.s32.totalorder %s12, 6
      %s19 = sphi 0, %s31
      %s20 = sphi 0, %s27
      %s21 = sphi 0, %s19
      %s22 = sphi 0, %s20
      %s23 = sphi 0, %s21
      %s24 = sphi 0, %s22
      %s32 = sphi 0, %s32
      %s34 = sphi 0, %s32
      %s35 = sphi 0, %s34
      %s49 = sphi 0, %s35
      %s53 = sphi 0, %s53
      %s55 = sphi 0, %s53
      %s56 = sphi 0, %s55
      %s70 = sphi 0, %s56
      %s78 = sphi 0, %s80
      %s81 = sphi 0, %s78
      %s82 = sphi 0, %s81
      %s98 = sphi 0, %s82
      %s106 = sphi 0, %s108
      %s109 = sphi 0, %s106
      %s110 = sphi 0, %s109
      %s126 = sphi 0, %s110
    $region4: #{tpu_custom_call.1} parent=1 // loop_header_branch
      %15 = sbr.rel (%p13) target = $region8
    $region5: #{tpu_custom_call.1} parent=1 // loop_body
      %s17 = ssub.s32 %s12, 1
      %s18 = ssub.s32 %s12, 2
      %s25 = sadd.s32 1, %s20
      %p26 = scmp.ge.s32.totalorder %s25, 2
      %s27 = scalar_select %p26, 0, %s25
      %s28 = sadd.s32 1, %s19
      %s29 = scalar_select %p26, %s28, %s19
      %p30 = scmp.ge.s32.totalorder %s29, 2
      %s31 = scalar_select %p30, 0, %s29
      %s33 = sadd.s32 %s32, 1
      %p36 = scmp.eq.s32.totalorder %s12, 3
      %p37 = scmp.ne.s32.totalorder %s32, %s34
      %p38 = scmp.eq.s32.totalorder %s12, 0
      %p39 = por %p37, %p38
      %p40 = scmp.ne.s32.totalorder %s32, %s34
      %p41 = scmp.eq.s32.totalorder %s17, 3
      %p42 = por %p40, %p41
      %p43 = scmp.ne.s32.totalorder %s34, %s35
      %p44 = scmp.eq.s32.totalorder %s17, 0
      %p45 = por %p43, %p44
      %p46 = scmp.ne.s32.totalorder %s34, %s35
      %p47 = scmp.eq.s32.totalorder %s18, 3
      %p48 = por %p46, %p47
      %p50 = scmp.ne.s32.totalorder %s35, %s49
      %p51 = scmp.eq.s32.totalorder %s18, 0
      %p52 = por %p50, %p51
      %s54 = sadd.s32 %s53, 1
      %p57 = scmp.eq.s32.totalorder %s12, 3
      %p58 = scmp.ne.s32.totalorder %s53, %s55
      %p59 = scmp.eq.s32.totalorder %s12, 0
      %p60 = por %p58, %p59
      %p61 = scmp.ne.s32.totalorder %s53, %s55
      %p62 = scmp.eq.s32.totalorder %s17, 3
      %p63 = por %p61, %p62
      %p64 = scmp.ne.s32.totalorder %s55, %s56
      %p65 = scmp.eq.s32.totalorder %s17, 0
      %p66 = por %p64, %p65
      %p67 = scmp.ne.s32.totalorder %s55, %s56
      %p68 = scmp.eq.s32.totalorder %s18, 3
      %p69 = por %p67, %p68
      %p71 = scmp.ne.s32.totalorder %s56, %s70
      %p72 = scmp.eq.s32.totalorder %s18, 0
      %p73 = por %p71, %p72
      %s74 = ssub.s32 %s19, %s31
      %s75 = ssub.s32 %s20, %s27
      %s76 = sor.u32 %s74, %s75
      %p77 = scmp.eq.s32.totalorder %s76, 0
      %s79 = sadd.s32 %s78, 1
      %s80 = scalar_select %p77, %s78, %s79
      %p83 = pneg %p77
      %p84 = scmp.eq.s32.totalorder %s12, 3
      %p85 = por %p83, %p84
      %p86 = scmp.ne.s32.totalorder %s78, %s81
      %p87 = scmp.eq.s32.totalorder %s12, 0
      %p88 = por %p86, %p87
      %p89 = scmp.ne.s32.totalorder %s78, %s81
      %p90 = scmp.eq.s32.totalorder %s17, 3
      %p91 = por %p89, %p90
      %p92 = scmp.ne.s32.totalorder %s81, %s82
      %p93 = scmp.eq.s32.totalorder %s17, 0
      %p94 = por %p92, %p93
      %p95 = scmp.ne.s32.totalorder %s81, %s82
      %p96 = scmp.eq.s32.totalorder %s18, 3
      %p97 = por %p95, %p96
      %p99 = scmp.ne.s32.totalorder %s82, %s98
      %p100 = scmp.eq.s32.totalorder %s18, 0
      %p101 = por %p99, %p100
      %s102 = ssub.s32 %s19, %s31
      %s103 = ssub.s32 %s20, %s27
      %s104 = sor.u32 %s102, %s103
      %p105 = scmp.eq.s32.totalorder %s104, 0
      %s107 = sadd.s32 %s106, 1
      %s108 = scalar_select %p105, %s106, %s107
      %p111 = pneg %p105
      %p112 = scmp.eq.s32.totalorder %s12, 3
      %p113 = por %p111, %p112
      %p114 = scmp.ne.s32.totalorder %s106, %s109
      %p115 = scmp.eq.s32.totalorder %s12, 0
      %p116 = por %p114, %p115
      %p117 = scmp.ne.s32.totalorder %s106, %s109
      %p118 = scmp.eq.s32.totalorder %s17, 3
      %p119 = por %p117, %p118
      %p120 = scmp.ne.s32.totalorder %s109, %s110
      %p121 = scmp.eq.s32.totalorder %s17, 0
      %p122 = por %p120, %p121
      %p123 = scmp.ne.s32.totalorder %s109, %s110
      %p124 = scmp.eq.s32.totalorder %s18, 3
      %p125 = por %p123, %p124
      %p127 = scmp.ne.s32.totalorder %s110, %s126
      %p128 = scmp.eq.s32.totalorder %s18, 0
      %p129 = por %p127, %p128
      %p130 = scmp.le.s32.totalorder 1, %s12
      %p131 = scmp.lt.s32.totalorder %s12, 5
      %p132 = pnand %p130, %p131
      %p133 = pneg %p132
      // Predicated region
      $region9: #{tpu_custom_call.1} parent=5 // pred_check
        _
      $region10: #{tpu_custom_call.1} parent=5 // pred_check_branch
        %135 = sbr.rel (%p132) target = $region12
      $region11: #{tpu_custom_call.1} parent=5 // pred_region
        %s136 = ssub.s32 %s12, 1
        // Predicated region
        $region13: #{tpu_custom_call.1} parent=11 // pred_check
          %p137 = pneg %p45
        $region14: #{tpu_custom_call.1} parent=11 // pred_check_branch
          %139 = sbr.rel (%p137) target = $region16
        $region15: #{tpu_custom_call.1} parent=11 // pred_region
          _
        $region16: #{tpu_custom_call.1} parent=11 // pred_fallthru
          _
        // Predicated region
        $region17: #{tpu_custom_call.1} parent=11 // pred_check
          %p140 = pneg %p66
        $region18: #{tpu_custom_call.1} parent=11 // pred_check_branch
          %142 = sbr.rel (%p140) target = $region20
        $region19: #{tpu_custom_call.1} parent=11 // pred_region
          _
        $region20: #{tpu_custom_call.1} parent=11 // pred_fallthru
          _
      $region12: #{tpu_custom_call.1} parent=5 // pred_fallthru
        _
      %p143 = scmp.lt.s32.totalorder %s12, 4
      // Predicated region
      $region21: #{tpu_custom_call.1} parent=5 // pred_check
        %p144 = pneg %p143
      $region22: #{tpu_custom_call.1} parent=5 // pred_check_branch
        %146 = sbr.rel (%p144) target = $region24
      $region23: #{tpu_custom_call.1} parent=5 // pred_region
        // Predicated region
        $region25: #{tpu_custom_call.1} parent=23 // pred_check
          %p147 = pneg %p88
        $region26: #{tpu_custom_call.1} parent=23 // pred_check_branch
          %149 = sbr.rel (%p147) target = $region28
        $region27: #{tpu_custom_call.1} parent=23 // pred_region
          %s150 = sand.u32 %s78, 1
          %s151 = sand.u32 %s78, 1
          %s152 = smul.addr %s151, 8
          %s153 = scalar_lea.vmem [#allocation2], %s152
          %s154 = smul.addr %s19, 4
          %s155 = sadd.s32 %s20, %s154
          %s156 = smul.addr %s155, 4
          %s157 = scalar_lea.vmem %s2, %s156
          // Predicated region
          $region29: #{tpu_custom_call.1} parent=27 // pred_check
            _
          $region30: #{tpu_custom_call.1} parent=27 // pred_check_branch
            %159 = sbr.rel (0) target = $region32
          $region31: #{tpu_custom_call.1} parent=27 // pred_region
            // Predicated region
            $region33: #{tpu_custom_call.1} parent=31 // pred_check
              _
            $region34: #{tpu_custom_call.1} parent=31 // pred_check_branch
              %161 = sbr.rel target = $region36
            $region35: #{tpu_custom_call.1} parent=31 // pred_region
              // Predicated region
              $region48: #{tpu_custom_call.1} parent=35 // pred_check
                _
              $region49: #{tpu_custom_call.1} parent=35 // pred_check_branch
                %178 = sbr.rel (0) target = $region51
              $region50: #{tpu_custom_call.1} parent=35 // pred_region
                loop: start=0, step=1, limit=1
                $region52: #{tpu_custom_call.1} parent=50 // loop_pre_header
                  _
                $region53: #{tpu_custom_call.1} parent=50 // loop_header
                  %s180 = sphi 0, %s184
                  %p181 = scmp.ge.s32.totalorder %s180, 1
                  %s185 = sphi %s157, %s157
                  %s186 = sphi %s153, %s153
                $region54: #{tpu_custom_call.1} parent=50 // loop_header_branch
                  %183 = sbr.rel (%p181) target = $region58
                $region55: #{tpu_custom_call.1} parent=50 // loop_body
                  _
                $region56: #{tpu_custom_call.1} parent=50 // loop_footer
                  %s184 = sadd.s32 1, %s180
                $region57: #{tpu_custom_call.1} parent=50 // loop_footer_branch
                  %179 = sbr.rel target = $region53
                $region58: #{tpu_custom_call.1} parent=50 // loop_exit
                  _
                loop: start=0, step=1, limit=1
                $region59: #{tpu_custom_call.1} parent=50 // loop_pre_header
                  _
                $region60: #{tpu_custom_call.1} parent=50 // loop_header
                  %s189 = sphi 0, %s193
                  %p190 = scmp.ge.s32.totalorder %s189, 1
                  %s194 = sphi %s157, %s157
                  %s195 = sphi %s153, %s153
                $region61: #{tpu_custom_call.1} parent=50 // loop_header_branch
                  %192 = sbr.rel (%p190) target = $region65
                $region62: #{tpu_custom_call.1} parent=50 // loop_body
                  %v196 = vld [vmem:[%s194] sm:$0xf]
                  %197 = vst [vmem:[%s195] sm:$0xf] %v196
                  %v198 = vld [vmem:[%s194 + $0x8] sm:$0xf]
                  %199 = vst [vmem:[%s195 + $0x4] sm:$0xf] %v198
                $region63: #{tpu_custom_call.1} parent=50 // loop_footer
                  %s193 = sadd.s32 1, %s189
                $region64: #{tpu_custom_call.1} parent=50 // loop_footer_branch
                  %188 = sbr.rel target = $region60
                $region65: #{tpu_custom_call.1} parent=50 // loop_exit
                  _
              $region51: #{tpu_custom_call.1} parent=35 // pred_fallthru
                _
            $region36: #{tpu_custom_call.1} parent=31 // pred_fallthru
              _
            // Predicated region
            $region37: #{tpu_custom_call.1} parent=31 // pred_check
              _
            $region38: #{tpu_custom_call.1} parent=31 // pred_check_branch
              %163 = sbr.rel (0) target = $region40
            $region39: #{tpu_custom_call.1} parent=31 // pred_region
              loop: start=0, step=1, limit=1
              $region41: #{tpu_custom_call.1} parent=39 // loop_pre_header
                _
              $region42: #{tpu_custom_call.1} parent=39 // loop_header
                %s166 = sphi 0, %s170
                %p167 = scmp.ge.s32.totalorder %s166, 1
                %s171 = sphi %s157, %s157
                %s172 = sphi %s153, %s153
              $region43: #{tpu_custom_call.1} parent=39 // loop_header_branch
                %169 = sbr.rel (%p167) target = $region47
              $region44: #{tpu_custom_call.1} parent=39 // loop_body
                %v173 = vld [vmem:[%s171] sm:$0xf]
                %174 = vst [vmem:[%s172] sm:$0xf] %v173
                %v175 = vld [vmem:[%s171 + $0x8] sm:$0xf]
                %176 = vst [vmem:[%s172 + $0x4] sm:$0xf] %v175
              $region45: #{tpu_custom_call.1} parent=39 // loop_footer
                %s170 = sadd.s32 1, %s166
              $region46: #{tpu_custom_call.1} parent=39 // loop_footer_branch
                %165 = sbr.rel target = $region42
              $region47: #{tpu_custom_call.1} parent=39 // loop_exit
                _
            $region40: #{tpu_custom_call.1} parent=31 // pred_fallthru
              _
          $region32: #{tpu_custom_call.1} parent=27 // pred_fallthru
            _
          %200 = vnop
        $region28: #{tpu_custom_call.1} parent=23 // pred_fallthru
          _
      $region24: #{tpu_custom_call.1} parent=5 // pred_fallthru
        _
      %p201 = scmp.le.s32.totalorder 1, %s12
      %p202 = scmp.lt.s32.totalorder %s12, 5
      %p203 = pnand %p201, %p202
      %p204 = pneg %p203
      // Predicated region
      $region66: #{tpu_custom_call.1} parent=5 // pred_check
        _
      $region67: #{tpu_custom_call.1} parent=5 // pred_check_branch
        %206 = sbr.rel (%p203) target = $region69
      $region68: #{tpu_custom_call.1} parent=5 // pred_region
        %s207 = ssub.s32 %s12, 1
        %s208 = sand.u32 %s81, 1
        %s209 = sand.u32 %s81, 1
        %s210 = smul.addr %s209, 8
        %s211 = scalar_lea.vmem [#allocation2], %s210
        // Predicated region
        $region70: #{tpu_custom_call.1} parent=68 // pred_check
          %p212 = pneg %p94
        $region71: #{tpu_custom_call.1} parent=68 // pred_check_branch
          %214 = sbr.rel (%p212) target = $region73
        $region72: #{tpu_custom_call.1} parent=68 // pred_region
          _
        $region73: #{tpu_custom_call.1} parent=68 // pred_fallthru
          _
        %p215 = pneg %p45
        %p216 = pneg %p42
        %p217 = pneg %p66
        %p218 = pneg %p63
        %s219 = sand.u32 %s81, 1
        %s220 = sand.u32 %s81, 1
        %s221 = smul.addr %s220, 8
        %s222 = scalar_lea.vmem [#allocation2], %s221
        %p223 = pneg %p94
        %p224 = pneg %p91
        %p225 = pneg %p122
        %p226 = pneg %p119
        %s227 = sand.u32 %s109, 1
        %s228 = scalar_lea.sflag [#allocation4], %s227
        %s229 = sand.u32 %s109, 1
        %s230 = smul.addr %s229, 32
        %s231 = scalar_lea.vmem [#allocation3], %s230
        %v233 = vld [vmem:[%s0] sm:$0xf]
        %v234 = vld [vmem:[%s0 + $0x4] sm:$0xf]
        %v235 = vld [vmem:[%s0 + $0x8] sm:$0xf]
        %v236 = vld [vmem:[%s0 + $0xc] sm:$0xf]
        %v237 = vld [vmem:[%s211] sm:$0xf]
        %v238 = vld [vmem:[%s211 + $0x4] sm:$0xf]
        %v239 = vld [vmem:[%s1] sm:$0xff]
        %v240 = vld [vmem:[%s1 + $0x8] sm:$0xff]
        %v241 = vld [vmem:[%s1 + $0x10] sm:$0xff]
        %v242 = vld [vmem:[%s1 + $0x18] sm:$0xff]
        %244 = vset.pattern.permute.xlu0 0
        %245 = vperm.xlu0 %244, %v239
        %v246 = vpop.permute.xlu0 %245
        %249 = vset.pattern.permute.xlu0 0
        %250 = vperm.xlu0 %249, %v240
        %v251 = vpop.permute.xlu0 %250
        %254 = vset.pattern.permute.xlu0 0
        %255 = vperm.xlu0 %254, %v241
        %v256 = vpop.permute.xlu0 %255
        %259 = vset.pattern.permute.xlu0 0
        %260 = vperm.xlu0 %259, %v242
        %v261 = vpop.permute.xlu0 %260
        %v267 = vunpack.c.l.b16 %v233
        %v268 = vunpack.c.l.b16 %v234
        %v269 = vunpack.c.l.b16 %v235
        %v270 = vunpack.c.l.b16 %v236
        %v271 = vpack.c.b16 %v268, %v267
        %v272 = vpack.c.b16 %v270, %v269
        %v275 = vunpack.c.l.b16 %v237
        %v276 = vunpack.c.l.b16 %v238
        %v277 = vpack.c.b16 %v276, %v275
        %vm279 = vcmask 130048
        %v281 = vsel %vm279, %v271, 0
        %v284 = vsel %vm279, %v272, 0
        %286 = vmatprep.subr.bf16.mxu0 0
        %287 = vmatpush1.bf16.msra.mxu0 %v277
        %288 = vmatprep.subr.bf16.mxu0 0
        %289 = vmatpush1.bf16.msra.mxu0 0
        %290 = vmatprep.subr.bf16.mxu0 0
        %291 = vmatpush1.bf16.msra.mxu0 0
        %292 = vmatprep.subr.bf16.mxu0 0
        %293 = vmatpush1.bf16.msra.mxu0 0
        %294 = vmatprep.subr.bf16.mxu0 0
        %295 = vmatpush1.bf16.msra.mxu0 0
        %296 = vmatprep.subr.bf16.mxu0 0
        %297 = vmatpush1.bf16.msra.mxu0 0
        %298 = vmatprep.subr.bf16.mxu0 0
        %299 = vmatpush1.bf16.msra.mxu0 0
        %300 = vmatprep.subr.bf16.mxu0 0
        %301 = vmatpush1.bf16.msra.mxu0 0
        %302 = vmatprep.subr.bf16.mxu0 0
        %303 = vmatpush1.bf16.msra.mxu0 0
        %304 = vmatprep.subr.bf16.mxu0 0
        %305 = vmatpush1.bf16.msra.mxu0 0
        %306 = vmatprep.subr.bf16.mxu0 0
        %307 = vmatpush1.bf16.msra.mxu0 0
        %308 = vmatprep.subr.bf16.mxu0 0
        %309 = vmatpush1.bf16.msra.mxu0 0
        %310 = vmatprep.subr.bf16.mxu0 0
        %311 = vmatpush1.bf16.msra.mxu0 0
        %312 = vmatprep.subr.bf16.mxu0 0
        %313 = vmatpush1.bf16.msra.mxu0 0
        %314 = vmatprep.subr.bf16.mxu0 0
        %315 = vmatpush1.bf16.msra.mxu0 0
        %316 = vmatprep.subr.bf16.mxu0 0
        %317 = vmatpush1.bf16.msra.mxu0 0
        %318 = vmatprep.mubr.bf16.mxu0 0
        %319 = vmatmul.mubr.bf16.gmra.mrb[0].mxu0 %v281
        %v320 = vpop.f32.mrb[0].mxu0
        %v321 = vadd.f32 %v246, %v320
        %v322 = vpop.f32.mrb[0].mxu0
        %v323 = vpop.f32.mrb[0].mxu0
        %v324 = vadd.f32 %v251, %v323
        %v325 = vpop.f32.mrb[0].mxu0
        %326 = vmatprep.mubr.bf16.mxu0 0
        %327 = vmatmul.mubr.bf16.gmra.mrb[0].mxu0 %v284
        %v328 = vpop.f32.mrb[0].mxu0
        %v329 = vadd.f32 %v256, %v328
        %v330 = vpop.f32.mrb[0].mxu0
        %v331 = vpop.f32.mrb[0].mxu0
        %v332 = vadd.f32 %v261, %v331
        %v333 = vpop.f32.mrb[0].mxu0
        %334 = vdwg.mxu0
        %vm335 = vcmp.ge.f32.partialorder %v321, 0.0
        %vm336 = vcmp.ge.f32.partialorder %v324, 0.0
        %vm337 = vcmp.ge.f32.partialorder %v329, 0.0
        %vm338 = vcmp.ge.f32.partialorder %v332, 0.0
        %v339 = vmul.f32 %v321, 0.2
        %v340 = vmul.f32 %v324, 0.2
        %v341 = vmul.f32 %v329, 0.2
        %v342 = vmul.f32 %v332, 0.2
        %v343 = vsel %vm335, %v321, %v339
        %v344 = vsel %vm336, %v324, %v340
        %v345 = vsel %vm337, %v329, %v341
        %v346 = vsel %vm338, %v332, %v342
        %347 = vst [vmem:[%s231] sm:$0xff] %v343
        %348 = vst [vmem:[%s231 + $0x8] sm:$0xff] %v344
        %349 = vst [vmem:[%s231 + $0x10] sm:$0xff] %v345
        %350 = vst [vmem:[%s231 + $0x18] sm:$0xff] %v346
        %s351 = sand.u32 %s109, 1
        %s352 = scalar_lea.sflag [#allocation4], %s351
        %s353 = sand.u32 %s109, 1
        %s354 = smul.addr %s353, 32
        %s355 = scalar_lea.vmem [#allocation3], %s354
        // Predicated region
        $region74: #{tpu_custom_call.1} parent=68 // pred_check
          %p356 = pneg %p119
        $region75: #{tpu_custom_call.1} parent=68 // pred_check_branch
          %358 = sbr.rel (%p356) target = $region77
        $region76: #{tpu_custom_call.1} parent=68 // pred_region
          %s360 = ssub.s32 512, 512
          %361 = vsyncadd %s352, %s360
          %s362 = smul.addr %s21, 8
          %s363 = sadd.s32 %s22, %s362
          %s364 = smul.addr %s363, 128
          %s365 = scalar_lea.hbm %s3, %s364
          %s366 = sshll.u32 %s355, 4
          %s367 = int_to_ptr.vmem [resolvable:$true] %s366
          %372 = dma.vmem_to_hbm [thread:$0]  %s367, 512, %s365, %s352, 128, 256, 8
        $region77: #{tpu_custom_call.1} parent=68 // pred_fallthru
          _
      $region69: #{tpu_custom_call.1} parent=5 // pred_fallthru
        _
      %p373 = scmp.le.s32.totalorder 2, %s12
      // Predicated region
      $region78: #{tpu_custom_call.1} parent=5 // pred_check
        %p374 = pneg %p373
      $region79: #{tpu_custom_call.1} parent=5 // pred_check_branch
        %376 = sbr.rel (%p374) target = $region81
      $region80: #{tpu_custom_call.1} parent=5 // pred_region
        %s377 = ssub.s32 %s12, 2
        // Predicated region
        $region82: #{tpu_custom_call.1} parent=80 // pred_check
          %p378 = pneg %p125
        $region83: #{tpu_custom_call.1} parent=80 // pred_check_branch
          %380 = sbr.rel (%p378) target = $region85
        $region84: #{tpu_custom_call.1} parent=80 // pred_region
          %s381 = sand.u32 %s110, 1
          %s382 = scalar_lea.sflag [#allocation4], %s381
          %s383 = sand.u32 %s110, 1
          %s384 = smul.addr %s383, 32
          %s385 = scalar_lea.vmem [#allocation3], %s384
          %386 = dma.done %s382, 512
        $region85: #{tpu_custom_call.1} parent=80 // pred_fallthru
          _
      $region81: #{tpu_custom_call.1} parent=5 // pred_fallthru
        _
    $region6: #{tpu_custom_call.1} parent=1 // loop_footer
      %s16 = sadd.s32 1, %s12
    $region7: #{tpu_custom_call.1} parent=1 // loop_footer_branch
      %11 = sbr.rel target = $region3
    $region8: #{tpu_custom_call.1} parent=1 // loop_exit
      _
    %387 = vsyncpa [#allocation4], 1
    %s388 = scalar_lea.sflag [#allocation4], 1
    %389 = vsyncpa %s388, 1

</llo_original>
